<compile_context>
chip_gen: v5e
topology: v5e:2x2
jax: 0.10.0
libtpu: 0.0.40
codegen_flags: <defaults>
</compile_context>

<pallas_src>
import functools

import jax
import jax.numpy as jnp
from jax.experimental import pallas as pl
from jax.experimental.pallas import tpu as pltpu


def _row_parallel_lora_kernel(x_ref, w_ref, bias_ref, a_ref, b_ref, o_ref,
                              acc_ref, lora_acc_ref):
    # Grid: (i over S tiles, j over N tiles, k over K tiles).  k is the reduction axis.
    # x_ref:        (TS, TK)
    # w_ref:        (TK, TN)   -- weight pre-transposed to (K, N)
    # bias_ref:     (1, TN)
    # a_ref:        (TK, R)    -- LoRA A pre-transposed to (K, R)
    # b_ref:        (R, TN)    -- LoRA B[0] pre-transposed to (R, N), pre-scaled by `scaling`
    # o_ref:        (TS, TN)
    # acc_ref:      (TS, TN) f32 scratch  (base matmul accumulator)
    # lora_acc_ref: (TS, R)  f32 scratch  (x @ A accumulator)
    k = pl.program_id(2)

    @pl.when(k == 0)
    def _():
        acc_ref[...] = jnp.zeros_like(acc_ref)
        lora_acc_ref[...] = jnp.zeros_like(lora_acc_ref)

    x = x_ref[...]
    acc_ref[...] += jnp.dot(x, w_ref[...], preferred_element_type=jnp.float32)
    lora_acc_ref[...] += jnp.dot(x, a_ref[...], preferred_element_type=jnp.float32)

    @pl.when(k == pl.num_programs(2) - 1)
    def _():
        # LoRA B already carries the `scaling` factor (folded in the wrapper).
        lora = jnp.dot(lora_acc_ref[...], b_ref[...].astype(jnp.float32),
                       preferred_element_type=jnp.float32)
        o_ref[...] = (acc_ref[...] + bias_ref[...] + lora).astype(o_ref.dtype)


def _round_up(x, m):
    return ((x + m - 1) // m) * m


def _pick_tile_k(K, desired):
    # tile_k must divide K exactly (garbage from padded K-blocks would corrupt the
    # reduction); fall back to progressively smaller power-of-two tiles, then K itself.
    t = min(desired, K)
    while t > 128 and K % t != 0:
        t //= 2
    if K % t != 0:
        t = K
    return t


def row_parallel_linear_with_lora(x, weight, bias, a_buffer, b_buffer, scaling,
                                  *, tile_s=256, tile_n=512, tile_k=512):
    """Fused base-linear + LoRA forward. Returns (output, output_bias=None)."""
    S, K = x.shape
    N, _ = weight.shape
    R = a_buffer.shape[0]

    # One-time layout prep in XLA (no per-grid-step transposes inside the kernel).
    w_t = weight.T                                   # (K, N)
    a_t = a_buffer.T                                 # (K, R)
    b_scaled = (b_buffer[0] * jnp.asarray(scaling, b_buffer.dtype)).T   # (R, N)
    bias2d = bias.reshape(1, N)

    # Clamp tiles to the (padded) problem size.  S-tile / N-tile padding is safe:
    # out-of-bounds rows/columns are clipped on the output write.
    ts = min(tile_s, _round_up(S, 8))
    tn = min(tile_n, _round_up(N, 128))
    tk = _pick_tile_k(K, tile_k)
    assert K % tk == 0

    grid = (pl.cdiv(S, ts), pl.cdiv(N, tn), K // tk)

    # Rough VMEM estimate (double-buffered inputs/outputs + scratch), with headroom.
    # Kept within the default scoped limits of all generations for these tile sizes.
    vmem_limit = 32 * 1024 * 1024

    out = pl.pallas_call(
        _row_parallel_lora_kernel,
        out_shape=jax.ShapeDtypeStruct((S, N), x.dtype),
        grid_spec=pltpu.PrefetchScalarGridSpec(
            num_scalar_prefetch=0,
            grid=grid,
            in_specs=[
                pl.BlockSpec((ts, tk), lambda i, j, k: (i, k)),   # x tile
                pl.BlockSpec((tk, tn), lambda i, j, k: (k, j)),   # W^T tile
                pl.BlockSpec((1, tn), lambda i, j, k: (0, j)),    # bias tile
                pl.BlockSpec((tk, R), lambda i, j, k: (k, 0)),    # A^T tile
                pl.BlockSpec((R, tn), lambda i, j, k: (0, j)),    # scaled B^T tile
            ],
            out_specs=pl.BlockSpec((ts, tn), lambda i, j, k: (i, j)),
            scratch_shapes=[
                pltpu.VMEM((ts, tn), jnp.float32),   # base accumulator
                pltpu.VMEM((ts, R), jnp.float32),    # lora_a accumulator
            ],
        ),
        compiler_params=pltpu.CompilerParams(
            dimension_semantics=("parallel", "parallel", "arbitrary"),
            vmem_limit_bytes=vmem_limit,
        ),
    )(x, w_t, bias2d, a_t, b_scaled)

    return out, None  # skip_bias_add=False -> output_bias is None


def reference(x, weight, bias, a_buffer, b_buffer, scaling):
    base = x @ weight.T + bias
    lora = (x @ a_buffer.T) @ b_buffer[0].T
    return base + scaling * lora


if __name__ == "__main__":
    # Small, deterministic shapes consistent with the module.
    S = 16          # number of tokens
    K = 128         # input_size_per_partition
    N = 128         # output_size
    R = 16          # lora_rank
    scaling = 0.5

    key = jax.random.PRNGKey(0)
    k1, k2, k3, k4, k5 = jax.random.split(key, 5)

    x = jax.random.normal(k1, (S, K), dtype=jnp.float32)
    weight = jax.random.normal(k2, (N, K), dtype=jnp.float32) * 0.05
    bias = jax.random.normal(k3, (N,), dtype=jnp.float32) * 0.1
    a_buffer = jax.random.normal(k4, (R, K), dtype=jnp.float32) * 0.05
    b_buffer = jax.random.normal(k5, (1, N, R), dtype=jnp.float32) * 0.05

    out, out_bias = row_parallel_linear_with_lora(
        x, weight, bias, a_buffer, b_buffer, scaling)
    out = jax.block_until_ready(out)

    ref = reference(x, weight, bias, a_buffer, b_buffer, scaling)
    assert out_bias is None
    assert jnp.allclose(out, ref, atol=1e-4, rtol=1e-4), "mismatch vs reference"

    print("KERNEL_OK")
</pallas_src>

<mosaic_0001>
module attributes {stable_mosaic.version = 11 : i64} {
  func.func @_row_parallel_lora_kernel(%arg0: i32, %arg1: i32, %arg2: i32, %arg3: memref<16x128xf32, #tpu.memory_space<vmem>>, %arg4: memref<128x128xf32, #tpu.memory_space<vmem>>, %arg5: memref<1x128xf32, #tpu.memory_space<vmem>>, %arg6: memref<128x16xf32, #tpu.memory_space<vmem>>, %arg7: memref<16x128xf32, #tpu.memory_space<vmem>>, %arg8: memref<16x128xf32, #tpu.memory_space<vmem>>, %arg9: memref<16x128xf32, #tpu.memory_space<vmem>>, %arg10: memref<16x16xf32, #tpu.memory_space<vmem>>) attributes {dimension_semantics = [#tpu.dimension_semantics<parallel>, #tpu.dimension_semantics<parallel>, #tpu.dimension_semantics<arbitrary>], iteration_bounds = array<i64: 1, 1, 1>, scalar_prefetch = 0 : i64, scratch_operands = 2 : i64, tpu.core_type = #tpu.core_type<tc>, window_params = [{transform_indices = @transform_0, window_bounds = array<i64: 16, 128>}, {transform_indices = @transform_1, window_bounds = array<i64: 128, 128>}, {transform_indices = @transform_2, window_bounds = array<i64: 1, 128>}, {transform_indices = @transform_3, window_bounds = array<i64: 128, 16>}, {transform_indices = @transform_4, window_bounds = array<i64: 16, 128>}, {transform_indices = @transform_5, window_bounds = array<i64: 16, 128>}]} {
    %c0_i32 = arith.constant 0 : i32
    %0 = arith.cmpi eq, %arg2, %c0_i32 : i32
    %1 = arith.extui %0 : i1 to i32
    %c0_i32_0 = arith.constant 0 : i32
    %2 = arith.cmpi ne, %1, %c0_i32_0 : i32
    scf.if %2 {
      %cst_17 = arith.constant 0.000000e+00 : f32
      %17 = vector.broadcast %cst_17 : f32 to vector<16x128xf32>
      %c0_18 = arith.constant 0 : index
      %c0_19 = arith.constant 0 : index
      %18 = vector.load %arg9[%c0_18, %c0_19] : memref<16x128xf32, #tpu.memory_space<vmem>>, vector<16x128xf32>
      tpu.vector_store %arg9[%c0_18, %c0_19], %17 {strides = array<i32>} : memref<16x128xf32, #tpu.memory_space<vmem>>, vector<16x128xf32>,
      %cst_20 = arith.constant 0.000000e+00 : f32
      %19 = vector.broadcast %cst_20 : f32 to vector<16x16xf32>
      %c0_21 = arith.constant 0 : index
      %c0_22 = arith.constant 0 : index
      %20 = vector.load %arg10[%c0_21, %c0_22] : memref<16x16xf32, #tpu.memory_space<vmem>>, vector<16x16xf32>
      tpu.vector_store %arg10[%c0_21, %c0_22], %19 {strides = array<i32>} : memref<16x16xf32, #tpu.memory_space<vmem>>, vector<16x16xf32>,
    } else {
    }
    %c0 = arith.constant 0 : index
    %c0_1 = arith.constant 0 : index
    %3 = vector.load %arg3[%c0, %c0_1] : memref<16x128xf32, #tpu.memory_space<vmem>>, vector<16x128xf32>
    %c0_2 = arith.constant 0 : index
    %c0_3 = arith.constant 0 : index
    %4 = vector.load %arg9[%c0_2, %c0_3] : memref<16x128xf32, #tpu.memory_space<vmem>>, vector<16x128xf32>
    %c0_4 = arith.constant 0 : index
    %c0_5 = arith.constant 0 : index
    %5 = vector.load %arg4[%c0_4, %c0_5] : memref<128x128xf32, #tpu.memory_space<vmem>>, vector<128x128xf32>
    %cst = arith.constant dense<0.000000e+00> : vector<16x128xf32>
    %6 = tpu.matmul %3, %5, %cst {dimension_numbers = #tpu.dot_dimension_numbers<[1], [0], [0], [1], [0, 0, 1, 1], [], []>} : vector<16x128xf32>, vector<128x128xf32>, vector<16x128xf32> -> vector<16x128xf32>
    %7 = arith.addf %4, %6 : vector<16x128xf32>
    %c0_6 = arith.constant 0 : index
    %c0_7 = arith.constant 0 : index
    %8 = vector.load %arg9[%c0_6, %c0_7] : memref<16x128xf32, #tpu.memory_space<vmem>>, vector<16x128xf32>
    tpu.vector_store %arg9[%c0_6, %c0_7], %7 {strides = array<i32>} : memref<16x128xf32, #tpu.memory_space<vmem>>, vector<16x128xf32>,
    %c0_8 = arith.constant 0 : index
    %c0_9 = arith.constant 0 : index
    %9 = vector.load %arg10[%c0_8, %c0_9] : memref<16x16xf32, #tpu.memory_space<vmem>>, vector<16x16xf32>
    %c0_10 = arith.constant 0 : index
    %c0_11 = arith.constant 0 : index
    %10 = vector.load %arg6[%c0_10, %c0_11] : memref<128x16xf32, #tpu.memory_space<vmem>>, vector<128x16xf32>
    %cst_12 = arith.constant dense<0.000000e+00> : vector<16x16xf32>
    %11 = tpu.matmul %3, %10, %cst_12 {dimension_numbers = #tpu.dot_dimension_numbers<[1], [0], [0], [1], [0, 0, 1, 1], [], []>} : vector<16x128xf32>, vector<128x16xf32>, vector<16x16xf32> -> vector<16x16xf32>
    %12 = arith.addf %9, %11 : vector<16x16xf32>
    %c0_13 = arith.constant 0 : index
    %c0_14 = arith.constant 0 : index
    %13 = vector.load %arg10[%c0_13, %c0_14] : memref<16x16xf32, #tpu.memory_space<vmem>>, vector<16x16xf32>
    tpu.vector_store %arg10[%c0_13, %c0_14], %12 {strides = array<i32>} : memref<16x16xf32, #tpu.memory_space<vmem>>, vector<16x16xf32>,
    %c0_i32_15 = arith.constant 0 : i32
    %14 = arith.cmpi eq, %arg2, %c0_i32_15 : i32
    %15 = arith.extui %14 : i1 to i32
    %c0_i32_16 = arith.constant 0 : i32
    %16 = arith.cmpi ne, %15, %c0_i32_16 : i32
    scf.if %16 {
      %c0_17 = arith.constant 0 : index
      %c0_18 = arith.constant 0 : index
      %17 = vector.load %arg10[%c0_17, %c0_18] : memref<16x16xf32, #tpu.memory_space<vmem>>, vector<16x16xf32>
      %c0_19 = arith.constant 0 : index
      %c0_20 = arith.constant 0 : index
      %18 = vector.load %arg7[%c0_19, %c0_20] : memref<16x128xf32, #tpu.memory_space<vmem>>, vector<16x128xf32>
      %cst_21 = arith.constant dense<0.000000e+00> : vector<16x128xf32>
      %19 = tpu.matmul %17, %18, %cst_21 {dimension_numbers = #tpu.dot_dimension_numbers<[1], [0], [0], [1], [0, 0, 1, 1], [], []>} : vector<16x16xf32>, vector<16x128xf32>, vector<16x128xf32> -> vector<16x128xf32>
      %c0_22 = arith.constant 0 : index
      %c0_23 = arith.constant 0 : index
      %20 = vector.load %arg9[%c0_22, %c0_23] : memref<16x128xf32, #tpu.memory_space<vmem>>, vector<16x128xf32>
      %c0_24 = arith.constant 0 : index
      %c0_25 = arith.constant 0 : index
      %21 = vector.load %arg5[%c0_24, %c0_25] : memref<1x128xf32, #tpu.memory_space<vmem>>, vector<1x128xf32>
      %22 = vector.broadcast %21 : vector<1x128xf32> to vector<16x128xf32>
      %23 = arith.addf %20, %22 : vector<16x128xf32>
      %24 = arith.addf %23, %19 : vector<16x128xf32>
      %c0_26 = arith.constant 0 : index
      %c0_27 = arith.constant 0 : index
      %25 = vector.load %arg8[%c0_26, %c0_27] : memref<16x128xf32, #tpu.memory_space<vmem>>, vector<16x128xf32>
      tpu.vector_store %arg8[%c0_26, %c0_27], %24 {strides = array<i32>} : memref<16x128xf32, #tpu.memory_space<vmem>>, vector<16x128xf32>,
    } else {
    }
    return
  }
  func.func @transform_0(%arg0: i32, %arg1: i32, %arg2: i32) -> (i32, i32) {
    %c0_i32 = arith.constant 0 : i32
    return %arg0, %arg2 : i32, i32
  }
  func.func @transform_1(%arg0: i32, %arg1: i32, %arg2: i32) -> (i32, i32) {
    %c0_i32 = arith.constant 0 : i32
    return %arg2, %arg1 : i32, i32
  }
  func.func @transform_2(%arg0: i32, %arg1: i32, %arg2: i32) -> (i32, i32) {
    %c0_i32 = arith.constant 0 : i32
    %c0_i32_0 = arith.constant 0 : i32
    return %c0_i32, %arg1 : i32, i32
  }
  func.func @transform_3(%arg0: i32, %arg1: i32, %arg2: i32) -> (i32, i32) {
    %c0_i32 = arith.constant 0 : i32
    %c0_i32_0 = arith.constant 0 : i32
    return %arg2, %c0_i32 : i32, i32
  }
  func.func @transform_4(%arg0: i32, %arg1: i32, %arg2: i32) -> (i32, i32) {
    %c0_i32 = arith.constant 0 : i32
    %c0_i32_0 = arith.constant 0 : i32
    return %c0_i32, %arg1 : i32, i32
  }
  func.func @transform_5(%arg0: i32, %arg1: i32, %arg2: i32) -> (i32, i32) {
    %c0_i32 = arith.constant 0 : i32
    return %arg0, %arg1 : i32, i32
  }
}

</mosaic_0001>

<llo_original>
// kernel: tpu_custom_call.1
$region0: #{tpu_custom_call.1}
  #allocation0 [shape = 'u32[]', space=smem, size = 0x4, offset = 0x4, fixed_abs, tag = 'smem constant byte address 0x4 - core index']
  #allocation1 [shape = 'u32[72,128]{1,0:T(1,128)}', space=vmem, size = 0x9000, scoped, tag = 'internal scratch']
  #allocation2 [shape = 'f32[16,128]{1,0:T(8,128)}', space=vmem, size = 0x2000, scoped, tag = 'scratch operand']
  #allocation3 [shape = 'f32[16,16]{1,0:T(8,128)}', space=vmem, size = 0x2000, scoped, tag = 'scratch operand']
  %s0 = inlined_call_operand.vmem [shape: f32[16,128], index: 0, kind: input, shape index: {}]
  %s1 = inlined_call_operand.vmem [shape: f32[128,128], index: 1, kind: input, shape index: {}]
  %s2 = inlined_call_operand.vmem [shape: f32[1,128], index: 2, kind: input, shape index: {}]
  %s3 = inlined_call_operand.vmem [shape: f32[128,16], index: 3, kind: input, shape index: {}]
  %s4 = inlined_call_operand.hbm [shape: f32[16,128], index: 4, kind: input, shape index: {}]
  %s5 = inlined_call_operand.hbm [shape: f32[16,128], index: 5, kind: output, shape index: {}]
  %s6 = sld [smem:[#allocation0]]
  $region42: #{tpu_custom_call.1} parent=0
    _
  %s8 = ssub.s32 1, %s6
  %s9 = scalar_select 0, %s8, %s6
  $region1: #{tpu_custom_call.1} parent=0
    #allocation4 [shape = 'u8[8192]{0}', space=vmem, size = 0x2000, scoped, tag = 'input window, operand 4, single buffered']
    #allocation5 [shape = 's32[1]{0}', space=sflag, size = 0x4, scoped, tag = 'scoped memory for tpu_custom_call.1']
    #allocation6 [shape = 's32[1]{0}', space=sflag, size = 0x4, scoped, tag = 'scoped memory for tpu_custom_call.1']
    #allocation7 [shape = 'u8[8192]{0}', space=vmem, size = 0x2000, scoped, tag = 'output window, operand 0, single buffered']
    %10 = vsyncpa [#allocation5], 0
    %11 = vsyncpa [#allocation6], 0
    // Predicated region
    $region2: #{tpu_custom_call.1} parent=1 // pred_check
      _
    $region3: #{tpu_custom_call.1} parent=1 // pred_check_branch
      %13 = sbr.rel (0) target = $region5
    $region4: #{tpu_custom_call.1} parent=1 // pred_region
      _
    $region5: #{tpu_custom_call.1} parent=1 // pred_fallthru
      _
    // Predicated region
    $region6: #{tpu_custom_call.1} parent=1 // pred_check
      _
    $region7: #{tpu_custom_call.1} parent=1 // pred_check_branch
      %15 = sbr.rel (0) target = $region9
    $region8: #{tpu_custom_call.1} parent=1 // pred_region
      _
    $region9: #{tpu_custom_call.1} parent=1 // pred_fallthru
      _
    // Predicated region
    $region10: #{tpu_custom_call.1} parent=1 // pred_check
      _
    $region11: #{tpu_custom_call.1} parent=1 // pred_check_branch
      %17 = sbr.rel (0) target = $region13
    $region12: #{tpu_custom_call.1} parent=1 // pred_region
      _
    $region13: #{tpu_custom_call.1} parent=1 // pred_fallthru
      _
    // Predicated region
    $region14: #{tpu_custom_call.1} parent=1 // pred_check
      _
    $region15: #{tpu_custom_call.1} parent=1 // pred_check_branch
      %19 = sbr.rel (0) target = $region17
    $region16: #{tpu_custom_call.1} parent=1 // pred_region
      _
    $region17: #{tpu_custom_call.1} parent=1 // pred_fallthru
      _
    // Predicated region
    $region18: #{tpu_custom_call.1} parent=1 // pred_check
      _
    $region19: #{tpu_custom_call.1} parent=1 // pred_check_branch
      %21 = sbr.rel (0) target = $region21
    $region20: #{tpu_custom_call.1} parent=1 // pred_region
      %23 = vsyncadd [#allocation5], 0
      %s24 = sshll.u32 %s4, 4
      %s25 = int_to_ptr.hbm [resolvable:$true] %s24
      %s26 = sshll.u32 [#allocation4], 4
      %s27 = int_to_ptr.vmem [resolvable:$true] %s26
      %32 = dma.hbm_to_vmem [thread:$0]  %s25, 256, %s27, [#allocation5], 128, 128, 8
    $region21: #{tpu_custom_call.1} parent=1 // pred_fallthru
      _
    // Predicated region
    $region22: #{tpu_custom_call.1} parent=1 // pred_check
      _
    $region23: #{tpu_custom_call.1} parent=1 // pred_check_branch
      %34 = sbr.rel (0) target = $region25
    $region24: #{tpu_custom_call.1} parent=1 // pred_region
      %36 = dma.done [#allocation5], 256
    $region25: #{tpu_custom_call.1} parent=1 // pred_fallthru
      _
    %p37 = scmp.eq.s32.totalorder 0, 0
    // Predicated region
    $region26: #{tpu_custom_call.1} parent=1 // pred_check
      %p38 = pneg %p37
    $region27: #{tpu_custom_call.1} parent=1 // pred_check_branch
      %40 = sbr.rel (%p38) target = $region29
    $region28: #{tpu_custom_call.1} parent=1 // pred_region
      %41 = vst [vmem:[#allocation2] sm:$0xff] 0.0
      %42 = vst [vmem:[#allocation2 + $0x8] sm:$0xff] 0.0
      %vm43 = vcmask 130048
      %44 = vst.msk [vmem:[#allocation3] sm:$0xff] %vm43, 0.0
      %45 = vst.msk [vmem:[#allocation3 + $0x8] sm:$0xff] %vm43, 0.0
    $region29: #{tpu_custom_call.1} parent=1 // pred_fallthru
      _
    %v46 = vld [vmem:[%s0] sm:$0xff]
    %v47 = vld [vmem:[%s0 + $0x8] sm:$0xff]
    %v48 = vld [vmem:[#allocation2] sm:$0xff]
    %v49 = vld [vmem:[#allocation2 + $0x8] sm:$0xff]
    %v50 = vld [vmem:[%s1] sm:$0xff]
    %v51 = vld [vmem:[%s1 + $0x8] sm:$0xff]
    %v52 = vld [vmem:[%s1 + $0x10] sm:$0xff]
    %v53 = vld [vmem:[%s1 + $0x18] sm:$0xff]
    %v54 = vld [vmem:[%s1 + $0x20] sm:$0xff]
    %v55 = vld [vmem:[%s1 + $0x28] sm:$0xff]
    %v56 = vld [vmem:[%s1 + $0x30] sm:$0xff]
    %v57 = vld [vmem:[%s1 + $0x38] sm:$0xff]
    %v58 = vld [vmem:[%s1 + $0x40] sm:$0xff]
    %v59 = vld [vmem:[%s1 + $0x48] sm:$0xff]
    %v60 = vld [vmem:[%s1 + $0x50] sm:$0xff]
    %v61 = vld [vmem:[%s1 + $0x58] sm:$0xff]
    %v62 = vld [vmem:[%s1 + $0x60] sm:$0xff]
    %v63 = vld [vmem:[%s1 + $0x68] sm:$0xff]
    %v64 = vld [vmem:[%s1 + $0x70] sm:$0xff]
    %v65 = vld [vmem:[%s1 + $0x78] sm:$0xff]
    %66 = vmatpush.msra.mxu0 %v65
    %67 = vmatpush.msra.mxu0 %v64
    %68 = vmatpush.msra.mxu0 %v63
    %69 = vmatpush.msra.mxu0 %v62
    %70 = vmatpush.msra.mxu0 %v61
    %71 = vmatpush.msra.mxu0 %v60
    %72 = vmatpush.msra.mxu0 %v59
    %73 = vmatpush.msra.mxu0 %v58
    %74 = vmatpush.msra.mxu0 %v57
    %75 = vmatpush.msra.mxu0 %v56
    %76 = vmatpush.msra.mxu0 %v55
    %77 = vmatpush.msra.mxu0 %v54
    %78 = vmatpush.msra.mxu0 %v53
    %79 = vmatpush.msra.mxu0 %v52
    %80 = vmatpush.msra.mxu0 %v51
    %81 = vmatpush.msra.mxu0 %v50
    %82 = vmatmul.f32.gmra.mxu0 %v46
    %v83 = vpop.f32.mrf.mxu0
    %v84 = vadd.f32 0.0, %v83
    %85 = vmatmul.f32.gmra.mxu0 %v47
    %v86 = vpop.f32.mrf.mxu0
    %v87 = vadd.f32 0.0, %v86
    %88 = vdwg.mxu0
    %v89 = vadd.f32 %v48, %v84
    %v90 = vadd.f32 %v49, %v87
    %91 = vst [vmem:[#allocation2] sm:$0xff] %v89
    %92 = vst [vmem:[#allocation2 + $0x8] sm:$0xff] %v90
    %v93 = vld [vmem:[#allocation3] sm:$0xff]
    %v94 = vld [vmem:[#allocation3 + $0x8] sm:$0xff]
    %v95 = vld [vmem:[%s3] sm:$0xff]
    %v96 = vld [vmem:[%s3 + $0x8] sm:$0xff]
    %v97 = vld [vmem:[%s3 + $0x10] sm:$0xff]
    %v98 = vld [vmem:[%s3 + $0x18] sm:$0xff]
    %v99 = vld [vmem:[%s3 + $0x20] sm:$0xff]
    %v100 = vld [vmem:[%s3 + $0x28] sm:$0xff]
    %v101 = vld [vmem:[%s3 + $0x30] sm:$0xff]
    %v102 = vld [vmem:[%s3 + $0x38] sm:$0xff]
    %v103 = vld [vmem:[%s3 + $0x40] sm:$0xff]
    %v104 = vld [vmem:[%s3 + $0x48] sm:$0xff]
    %v105 = vld [vmem:[%s3 + $0x50] sm:$0xff]
    %v106 = vld [vmem:[%s3 + $0x58] sm:$0xff]
    %v107 = vld [vmem:[%s3 + $0x60] sm:$0xff]
    %v108 = vld [vmem:[%s3 + $0x68] sm:$0xff]
    %v109 = vld [vmem:[%s3 + $0x70] sm:$0xff]
    %v110 = vld [vmem:[%s3 + $0x78] sm:$0xff]
    %111 = vmatpush.msra.mxu0 %v110
    %112 = vmatpush.msra.mxu0 %v109
    %113 = vmatpush.msra.mxu0 %v108
    %114 = vmatpush.msra.mxu0 %v107
    %115 = vmatpush.msra.mxu0 %v106
    %116 = vmatpush.msra.mxu0 %v105
    %117 = vmatpush.msra.mxu0 %v104
    %118 = vmatpush.msra.mxu0 %v103
    %119 = vmatpush.msra.mxu0 %v102
    %120 = vmatpush.msra.mxu0 %v101
    %121 = vmatpush.msra.mxu0 %v100
    %122 = vmatpush.msra.mxu0 %v99
    %123 = vmatpush.msra.mxu0 %v98
    %124 = vmatpush.msra.mxu0 %v97
    %125 = vmatpush.msra.mxu0 %v96
    %126 = vmatpush.msra.mxu0 %v95
    %127 = vmatmul.f32.gmra.mxu0 %v46
    %v128 = vpop.f32.mrf.mxu0
    %v129 = vadd.f32 0.0, %v128
    %130 = vmatmul.f32.gmra.mxu0 %v47
    %v131 = vpop.f32.mrf.mxu0
    %v132 = vadd.f32 0.0, %v131
    %133 = vdwg.mxu0
    %v134 = vadd.f32 %v93, %v129
    %v135 = vadd.f32 %v94, %v132
    %vm136 = vcmask 130048
    %137 = vst.msk [vmem:[#allocation3] sm:$0xff] %vm136, %v134
    %138 = vst.msk [vmem:[#allocation3 + $0x8] sm:$0xff] %vm136, %v135
    // Predicated region
    $region30: #{tpu_custom_call.1} parent=1 // pred_check
      %p139 = pneg %p37
    $region31: #{tpu_custom_call.1} parent=1 // pred_check_branch
      %141 = sbr.rel (%p139) target = $region33
    $region32: #{tpu_custom_call.1} parent=1 // pred_region
      %v142 = vld [vmem:[#allocation3] sm:$0xff]
      %v143 = vld [vmem:[#allocation3 + $0x8] sm:$0xff]
      %v144 = vld [vmem:[#allocation4] sm:$0xff]
      %v145 = vld [vmem:[#allocation4 + $0x8] sm:$0xff]
      %v147 = vsel %vm136, %v142, 0
      %v150 = vsel %vm136, %v143, 0
      %152 = vmatpush.msra.mxu0 0.0
      %153 = vmatpush.msra.mxu0 0.0
      %154 = vmatpush.msra.mxu0 0.0
      %155 = vmatpush.msra.mxu0 0.0
      %156 = vmatpush.msra.mxu0 0.0
      %157 = vmatpush.msra.mxu0 0.0
      %158 = vmatpush.msra.mxu0 0.0
      %159 = vmatpush.msra.mxu0 0.0
      %160 = vmatpush.msra.mxu0 0.0
      %161 = vmatpush.msra.mxu0 0.0
      %162 = vmatpush.msra.mxu0 0.0
      %163 = vmatpush.msra.mxu0 0.0
      %164 = vmatpush.msra.mxu0 0.0
      %165 = vmatpush.msra.mxu0 0.0
      %166 = vmatpush.msra.mxu0 %v145
      %167 = vmatpush.msra.mxu0 %v144
      %168 = vmatmul.f32.gmra.mxu0 %v147
      %v169 = vpop.f32.mrf.mxu0
      %v170 = vadd.f32 0.0, %v169
      %171 = vmatmul.f32.gmra.mxu0 %v150
      %v172 = vpop.f32.mrf.mxu0
      %v173 = vadd.f32 0.0, %v172
      %174 = vdwg.mxu0
      %v175 = vld [vmem:[#allocation2] sm:$0xff]
      %v176 = vld [vmem:[#allocation2 + $0x8] sm:$0xff]
      %v177 = vld [vmem:[%s2] sm:$0x1]
      %v179 = vperm.slane %v177, 0
      %v181 = vadd.f32 %v175, %v179
      %v182 = vadd.f32 %v176, %v179
      %v183 = vadd.f32 %v181, %v170
      %v184 = vadd.f32 %v182, %v173
      %185 = vst [vmem:[#allocation7] sm:$0xff] %v183
      %186 = vst [vmem:[#allocation7 + $0x8] sm:$0xff] %v184
    $region33: #{tpu_custom_call.1} parent=1 // pred_fallthru
      _
    // Predicated region
    $region34: #{tpu_custom_call.1} parent=1 // pred_check
      _
    $region35: #{tpu_custom_call.1} parent=1 // pred_check_branch
      %188 = sbr.rel (0) target = $region37
    $region36: #{tpu_custom_call.1} parent=1 // pred_region
      %190 = vsyncadd [#allocation6], 0
      %s191 = sshll.u32 [#allocation7], 4
      %s192 = int_to_ptr.vmem [resolvable:$true] %s191
      %s193 = sshll.u32 %s5, 4
      %s194 = int_to_ptr.hbm [resolvable:$true] %s193
      %199 = dma.vmem_to_hbm [thread:$0]  %s192, 256, %s194, [#allocation6], 128, 128, 8
    $region37: #{tpu_custom_call.1} parent=1 // pred_fallthru
      _
    // Predicated region
    $region38: #{tpu_custom_call.1} parent=1 // pred_check
      _
    $region39: #{tpu_custom_call.1} parent=1 // pred_check_branch
      %201 = sbr.rel (0) target = $region41
    $region40: #{tpu_custom_call.1} parent=1 // pred_region
      %203 = dma.done [#allocation6], 256
    $region41: #{tpu_custom_call.1} parent=1 // pred_fallthru
      _
    %204 = vsyncpa [#allocation5], 1
    %205 = vsyncpa [#allocation6], 1

</llo_original>
